<compile_context>
chip_gen: v6e
topology: v6e:2x2x1
jax: 0.10.0
libtpu: 0.0.40
codegen_flags: <defaults>
</compile_context>

<pallas_src>
import jax
import jax.numpy as jnp
from jax.experimental import pallas as pl
from jax.experimental.pallas import tpu as pltpu

LANE = 128     # TPU lane width (last dim of a vreg)
SUBLANE = 8    # f32 sublane width (second-to-last dim)


def _round_up(n, m):
    return ((n + m - 1) // m) * m


def mlp_kernel(x_ref, w1_ref, b1_ref, w2_ref, b2_ref, o_ref):
    """One batch tile: y = sigmoid(relu(x @ W1 + b1) @ W2 + b2)."""
    x = x_ref[...]
    # First linear layer (MXU, f32 accumulation) + bias; ReLU on the VPU.
    h = jnp.dot(x, w1_ref[...], preferred_element_type=jnp.float32) + b1_ref[...]
    h = jnp.maximum(h, 0.0)
    # Second linear layer + bias; output has only out_size (unpadded) columns.
    y = jnp.dot(h, w2_ref[...], preferred_element_type=jnp.float32) + b2_ref[...]
    # Exact sigmoid (matches torch.nn.Sigmoid): exp on EUP, exact divide.
    # exp(-y) -> +inf for very negative y gives 1/inf = 0, the correct limit.
    o_ref[...] = (1.0 / (1.0 + jnp.exp(-y))).astype(o_ref.dtype)


def prepare_params(w1, b1, w2, b2):
    """Pad parameters ONCE (call outside the per-forward path).

    Weights are stored as (in_features, out_features), so the kernel computes
    x @ W + b (equivalent to PyTorch's x @ W.T + b with W:(out, in)).
    Only the hidden dim is padded (to a multiple of 128 lanes); the output
    feature dim is left unpadded so the kernel's HBM write is not amplified.
    """
    hidden = w1.shape[1]
    hid_p = _round_up(hidden, LANE)
    w1p = jnp.pad(w1, ((0, 0), (0, hid_p - hidden)))
    b1p = jnp.pad(b1.reshape(1, -1), ((0, 0), (0, hid_p - hidden)))
    w2p = jnp.pad(w2, ((0, hid_p - hidden), (0, 0)))
    b2p = b2.reshape(1, -1)
    return w1p, b1p, w2p, b2p


def mlp_forward(x, params, *, block_b=1024):
    """Batch-tiled Pallas call. `params` must come from prepare_params()."""
    w1p, b1p, w2p, b2p = params
    B, in_size = x.shape
    hid_p = w1p.shape[1]
    out_size = w2p.shape[1]

    # Large batch tiles (amortize per-grid-step overhead), but keep at least
    # two grid steps when possible so both v7x TensorCores get work.
    b_pad8 = _round_up(B, SUBLANE)
    half = _round_up(pl.cdiv(b_pad8, 2), SUBLANE)
    tb = max(SUBLANE, min(block_b, half))
    b_pad = _round_up(B, tb)

    xp = x if b_pad == B else jnp.pad(x, ((0, b_pad - B), (0, 0)))

    grid = (b_pad // tb,)

    out = pl.pallas_call(
        mlp_kernel,
        out_shape=jax.ShapeDtypeStruct((b_pad, out_size), jnp.float32),
        grid_spec=pltpu.PrefetchScalarGridSpec(
            num_scalar_prefetch=0,
            grid=grid,
            in_specs=[
                # x streams through VMEM: one batch tile per grid step.
                pl.BlockSpec((tb, in_size), lambda i: (i, 0)),
                # Weights / biases: grid-invariant index_map -> VMEM-resident.
                pl.BlockSpec((in_size, hid_p), lambda i: (0, 0)),
                pl.BlockSpec((1, hid_p), lambda i: (0, 0)),
                pl.BlockSpec((hid_p, out_size), lambda i: (0, 0)),
                pl.BlockSpec((1, out_size), lambda i: (0, 0)),
            ],
            # Output block keeps the true (unpadded) feature width -> HBM
            # writes are only the real bytes (no 16x lane-padding blowup).
            out_specs=pl.BlockSpec((tb, out_size), lambda i: (i, 0)),
        ),
        compiler_params=pltpu.CompilerParams(
            dimension_semantics=("parallel",),
        ),
    )(xp, w1p, b1p, w2p, b2p)

    # Only slice when batch padding was actually added (it is not for the demo
    # shapes), and even then the slice runs over the narrow (b_pad, out_size)
    # array rather than a lane-padded one.
    return out if b_pad == B else out[:B]


def init_params(key, input_size, hidden_size, output_size):
    """PyTorch-style init: U(-1/sqrt(fan_in), 1/sqrt(fan_in)), f32 weights."""
    k1, k2, k3, k4 = jax.random.split(key, 4)
    bound1 = 1.0 / jnp.sqrt(input_size)
    bound2 = 1.0 / jnp.sqrt(hidden_size)
    # Stored as (in, out); biases kept 2D (1, out) for TPU-friendly layout.
    w1 = jax.random.uniform(k1, (input_size, hidden_size), jnp.float32,
                            minval=-bound1, maxval=bound1)
    b1 = jax.random.uniform(k2, (1, hidden_size), jnp.float32,
                            minval=-bound1, maxval=bound1)
    w2 = jax.random.uniform(k3, (hidden_size, output_size), jnp.float32,
                            minval=-bound2, maxval=bound2)
    b2 = jax.random.uniform(k4, (1, output_size), jnp.float32,
                            minval=-bound2, maxval=bound2)
    return w1, b1, w2, b2


def reference_forward(x, w1, b1, w2, b2):
    h = jnp.maximum(x @ w1 + b1, 0.0)
    return jax.nn.sigmoid(h @ w2 + b2)


if __name__ == "__main__":
    key = jax.random.PRNGKey(0)
    kx, kp = jax.random.split(key)

    # Small MLP dims matching the module's spirit; batch large enough to
    # exercise the batch-tiled grid (two 256-row tiles -> both v7x TCs busy).
    batch = 512
    input_size = 16
    hidden_size = 32
    output_size = 8

    x = jax.random.normal(kx, (batch, input_size), jnp.float32)
    w1, b1, w2, b2 = init_params(kp, input_size, hidden_size, output_size)

    # Pad the parameters once, outside the per-call path.
    params = prepare_params(w1, b1, w2, b2)

    out = mlp_forward(x, params)
    out = jax.block_until_ready(out)

    ref = reference_forward(x, w1, b1, w2, b2)
    assert out.shape == (batch, output_size)
    # Exact sigmoid in-kernel: remaining difference is MXU f32 matmul rounding
    # vs. the XLA reference matmul only.
    assert jnp.allclose(out, ref, atol=1e-4, rtol=1e-4), float(
        jnp.max(jnp.abs(out - ref)))

    print("KERNEL_OK")
</pallas_src>

<mosaic_0001>
module attributes {stable_mosaic.version = 11 : i64} {
  func.func @mlp_kernel(%arg0: i32, %arg1: memref<256x16xf32, #tpu.memory_space<vmem>>, %arg2: memref<16x128xf32, #tpu.memory_space<vmem>>, %arg3: memref<1x128xf32, #tpu.memory_space<vmem>>, %arg4: memref<128x8xf32, #tpu.memory_space<vmem>>, %arg5: memref<1x8xf32, #tpu.memory_space<vmem>>, %arg6: memref<256x8xf32, #tpu.memory_space<vmem>>) attributes {dimension_semantics = [#tpu.dimension_semantics<parallel>], iteration_bounds = array<i64: 2>, scalar_prefetch = 0 : i64, scratch_operands = 0 : i64, tpu.core_type = #tpu.core_type<tc>, window_params = [{transform_indices = @transform_0, window_bounds = array<i64: 256, 16>}, {pipeline_mode = #tpu.pipeline_mode<synchronous>, transform_indices = @transform_1, window_bounds = array<i64: 16, 128>}, {pipeline_mode = #tpu.pipeline_mode<synchronous>, transform_indices = @transform_2, window_bounds = array<i64: 1, 128>}, {pipeline_mode = #tpu.pipeline_mode<synchronous>, transform_indices = @transform_3, window_bounds = array<i64: 128, 8>}, {pipeline_mode = #tpu.pipeline_mode<synchronous>, transform_indices = @transform_4, window_bounds = array<i64: 1, 8>}, {transform_indices = @transform_5, window_bounds = array<i64: 256, 8>}]} {
    %c0 = arith.constant 0 : index
    %c0_0 = arith.constant 0 : index
    %0 = vector.load %arg1[%c0, %c0_0] : memref<256x16xf32, #tpu.memory_space<vmem>>, vector<256x16xf32>
    %c0_1 = arith.constant 0 : index
    %c0_2 = arith.constant 0 : index
    %1 = vector.load %arg2[%c0_1, %c0_2] : memref<16x128xf32, #tpu.memory_space<vmem>>, vector<16x128xf32>
    %cst = arith.constant dense<0.000000e+00> : vector<256x128xf32>
    %2 = tpu.matmul %0, %1, %cst {dimension_numbers = #tpu.dot_dimension_numbers<[1], [0], [0], [1], [0, 0, 1, 1], [], []>} : vector<256x16xf32>, vector<16x128xf32>, vector<256x128xf32> -> vector<256x128xf32>
    %c0_3 = arith.constant 0 : index
    %c0_4 = arith.constant 0 : index
    %3 = vector.load %arg3[%c0_3, %c0_4] : memref<1x128xf32, #tpu.memory_space<vmem>>, vector<1x128xf32>
    %4 = vector.broadcast %3 : vector<1x128xf32> to vector<256x128xf32>
    %5 = arith.addf %2, %4 : vector<256x128xf32>
    %cst_5 = arith.constant 0.000000e+00 : f32
    %6 = vector.broadcast %cst_5 : f32 to vector<256x128xf32>
    %7 = arith.maximumf %5, %6 : vector<256x128xf32>
    %c0_6 = arith.constant 0 : index
    %c0_7 = arith.constant 0 : index
    %8 = vector.load %arg4[%c0_6, %c0_7] : memref<128x8xf32, #tpu.memory_space<vmem>>, vector<128x8xf32>
    %cst_8 = arith.constant dense<0.000000e+00> : vector<256x8xf32>
    %9 = tpu.matmul %7, %8, %cst_8 {dimension_numbers = #tpu.dot_dimension_numbers<[1], [0], [0], [1], [0, 0, 1, 1], [], []>} : vector<256x128xf32>, vector<128x8xf32>, vector<256x8xf32> -> vector<256x8xf32>
    %c0_9 = arith.constant 0 : index
    %c0_10 = arith.constant 0 : index
    %10 = vector.load %arg5[%c0_9, %c0_10] : memref<1x8xf32, #tpu.memory_space<vmem>>, vector<1x8xf32>
    %11 = vector.broadcast %10 : vector<1x8xf32> to vector<256x8xf32>
    %12 = arith.addf %9, %11 : vector<256x8xf32>
    %cst_11 = arith.constant 0.000000e+00 : f32
    %13 = vector.broadcast %cst_11 : f32 to vector<256x8xf32>
    %14 = arith.subf %13, %12 : vector<256x8xf32>
    %15 = math.exp %14 : vector<256x8xf32>
    %cst_12 = arith.constant 1.000000e+00 : f32
    %16 = vector.broadcast %cst_12 : f32 to vector<256x8xf32>
    %17 = arith.addf %16, %15 : vector<256x8xf32>
    %cst_13 = arith.constant 1.000000e+00 : f32
    %18 = vector.broadcast %cst_13 : f32 to vector<256x8xf32>
    %19 = arith.divf %18, %17 : vector<256x8xf32>
    %c0_14 = arith.constant 0 : index
    %c0_15 = arith.constant 0 : index
    %20 = vector.load %arg6[%c0_14, %c0_15] : memref<256x8xf32, #tpu.memory_space<vmem>>, vector<256x8xf32>
    tpu.vector_store %arg6[%c0_14, %c0_15], %19 {strides = array<i32>} : memref<256x8xf32, #tpu.memory_space<vmem>>, vector<256x8xf32>,
    return
  }
  func.func @transform_0(%arg0: i32) -> (i32, i32) {
    %c0_i32 = arith.constant 0 : i32
    %c0_i32_0 = arith.constant 0 : i32
    return %arg0, %c0_i32 : i32, i32
  }
  func.func @transform_1(%arg0: i32) -> (i32, i32) {
    %c0_i32 = arith.constant 0 : i32
    %c0_i32_0 = arith.constant 0 : i32
    %c0_i32_1 = arith.constant 0 : i32
    return %c0_i32, %c0_i32_0 : i32, i32
  }
  func.func @transform_2(%arg0: i32) -> (i32, i32) {
    %c0_i32 = arith.constant 0 : i32
    %c0_i32_0 = arith.constant 0 : i32
    %c0_i32_1 = arith.constant 0 : i32
    return %c0_i32, %c0_i32_0 : i32, i32
  }
  func.func @transform_3(%arg0: i32) -> (i32, i32) {
    %c0_i32 = arith.constant 0 : i32
    %c0_i32_0 = arith.constant 0 : i32
    %c0_i32_1 = arith.constant 0 : i32
    return %c0_i32, %c0_i32_0 : i32, i32
  }
  func.func @transform_4(%arg0: i32) -> (i32, i32) {
    %c0_i32 = arith.constant 0 : i32
    %c0_i32_0 = arith.constant 0 : i32
    %c0_i32_1 = arith.constant 0 : i32
    return %c0_i32, %c0_i32_0 : i32, i32
  }
  func.func @transform_5(%arg0: i32) -> (i32, i32) {
    %c0_i32 = arith.constant 0 : i32
    %c0_i32_0 = arith.constant 0 : i32
    return %arg0, %c0_i32 : i32, i32
  }
}

</mosaic_0001>

<llo_original>
// kernel: tpu_custom_call.1
$region0: #{tpu_custom_call.1}
  #allocation0 [shape = 'u32[]', space=smem, size = 0x4, offset = 0x4, fixed_abs, tag = 'smem constant byte address 0x4 - core index']
  #allocation1 [shape = 'u32[144,128]{1,0:T(1,128)}', space=vmem, size = 0x12000, scoped, tag = 'internal scratch']
  %s0 = inlined_call_operand.vmem [shape: f32[512,16], index: 0, kind: input, shape index: {}]
  %s1 = inlined_call_operand.vmem [shape: f32[16,128], index: 1, kind: input, shape index: {}]
  %s2 = inlined_call_operand.vmem [shape: f32[1,128], index: 2, kind: input, shape index: {}]
  %s3 = inlined_call_operand.vmem [shape: f32[128,8], index: 3, kind: input, shape index: {}]
  %s4 = inlined_call_operand.vmem [shape: f32[1,8], index: 4, kind: input, shape index: {}]
  %s5 = inlined_call_operand.vmem [shape: f32[512,8], index: 5, kind: output, shape index: {}]
  %s6 = sld [smem:[#allocation0]]
  $region53: #{tpu_custom_call.1} parent=0
    _
  %s8 = ssub.s32 1, %s6
  %s9 = scalar_select 0, %s8, %s6
  loop: start=0, step=1, limit=4
  $region2: #{tpu_custom_call.1} parent=0 // loop_pre_header
    _
  $region3: #{tpu_custom_call.1} parent=0 // loop_header
    %s11 = sphi 0, %s15
    %p12 = scmp.ge.s32.totalorder %s11, 4
    %s21 = sphi 0, %s23
    %s24 = sphi 0, %s21
    %s25 = sphi 0, %s24
    %s41 = sphi 0, %s25
    %s45 = sphi 0, %s45
    %s47 = sphi 0, %s45
    %s48 = sphi 0, %s47
    %s62 = sphi 0, %s48
    %s66 = sphi 0, %s66
    %s68 = sphi 0, %s66
    %s69 = sphi 0, %s68
    %s83 = sphi 0, %s69
    %s87 = sphi 0, %s87
    %s89 = sphi 0, %s87
    %s90 = sphi 0, %s89
    %s104 = sphi 0, %s90
    %s108 = sphi 0, %s108
    %s110 = sphi 0, %s108
    %s111 = sphi 0, %s110
    %s125 = sphi 0, %s111
    %s131 = sphi 0, %s133
    %s134 = sphi 0, %s131
    %s135 = sphi 0, %s134
    %s151 = sphi 0, %s135
  $region4: #{tpu_custom_call.1} parent=0 // loop_header_branch
    %14 = sbr.rel (%p12) target = $region8
  $region5: #{tpu_custom_call.1} parent=0 // loop_body
    %s16 = ssub.s32 %s11, 1
    %s17 = ssub.s32 %s11, 2
    %s18 = sadd.s32 %s11, 1
    %s19 = ssub.s32 %s11, %s18
    %p20 = scmp.eq.s32.totalorder %s19, 0
    %s22 = sadd.s32 %s21, 1
    %s23 = scalar_select %p20, %s21, %s22
    %p26 = pneg %p20
    %p27 = scmp.eq.s32.totalorder %s11, 1
    %p28 = por %p26, %p27
    %p29 = scmp.ne.s32.totalorder %s21, %s24
    %p30 = scmp.eq.s32.totalorder %s11, 0
    %p31 = por %p29, %p30
    %p32 = scmp.ne.s32.totalorder %s21, %s24
    %p33 = scmp.eq.s32.totalorder %s16, 1
    %p34 = por %p32, %p33
    %p35 = scmp.ne.s32.totalorder %s24, %s25
    %p36 = scmp.eq.s32.totalorder %s16, 0
    %p37 = por %p35, %p36
    %p38 = scmp.ne.s32.totalorder %s24, %s25
    %p39 = scmp.eq.s32.totalorder %s17, 1
    %p40 = por %p38, %p39
    %p42 = scmp.ne.s32.totalorder %s25, %s41
    %p43 = scmp.eq.s32.totalorder %s17, 0
    %p44 = por %p42, %p43
    %s46 = sadd.s32 %s45, 1
    %p49 = scmp.eq.s32.totalorder %s11, 1
    %p50 = scmp.ne.s32.totalorder %s45, %s47
    %p51 = scmp.eq.s32.totalorder %s11, 0
    %p52 = por %p50, %p51
    %p53 = scmp.ne.s32.totalorder %s45, %s47
    %p54 = scmp.eq.s32.totalorder %s16, 1
    %p55 = por %p53, %p54
    %p56 = scmp.ne.s32.totalorder %s47, %s48
    %p57 = scmp.eq.s32.totalorder %s16, 0
    %p58 = por %p56, %p57
    %p59 = scmp.ne.s32.totalorder %s47, %s48
    %p60 = scmp.eq.s32.totalorder %s17, 1
    %p61 = por %p59, %p60
    %p63 = scmp.ne.s32.totalorder %s48, %s62
    %p64 = scmp.eq.s32.totalorder %s17, 0
    %p65 = por %p63, %p64
    %s67 = sadd.s32 %s66, 1
    %p70 = scmp.eq.s32.totalorder %s11, 1
    %p71 = scmp.ne.s32.totalorder %s66, %s68
    %p72 = scmp.eq.s32.totalorder %s11, 0
    %p73 = por %p71, %p72
    %p74 = scmp.ne.s32.totalorder %s66, %s68
    %p75 = scmp.eq.s32.totalorder %s16, 1
    %p76 = por %p74, %p75
    %p77 = scmp.ne.s32.totalorder %s68, %s69
    %p78 = scmp.eq.s32.totalorder %s16, 0
    %p79 = por %p77, %p78
    %p80 = scmp.ne.s32.totalorder %s68, %s69
    %p81 = scmp.eq.s32.totalorder %s17, 1
    %p82 = por %p80, %p81
    %p84 = scmp.ne.s32.totalorder %s69, %s83
    %p85 = scmp.eq.s32.totalorder %s17, 0
    %p86 = por %p84, %p85
    %s88 = sadd.s32 %s87, 1
    %p91 = scmp.eq.s32.totalorder %s11, 1
    %p92 = scmp.ne.s32.totalorder %s87, %s89
    %p93 = scmp.eq.s32.totalorder %s11, 0
    %p94 = por %p92, %p93
    %p95 = scmp.ne.s32.totalorder %s87, %s89
    %p96 = scmp.eq.s32.totalorder %s16, 1
    %p97 = por %p95, %p96
    %p98 = scmp.ne.s32.totalorder %s89, %s90
    %p99 = scmp.eq.s32.totalorder %s16, 0
    %p100 = por %p98, %p99
    %p101 = scmp.ne.s32.totalorder %s89, %s90
    %p102 = scmp.eq.s32.totalorder %s17, 1
    %p103 = por %p101, %p102
    %p105 = scmp.ne.s32.totalorder %s90, %s104
    %p106 = scmp.eq.s32.totalorder %s17, 0
    %p107 = por %p105, %p106
    %s109 = sadd.s32 %s108, 1
    %p112 = scmp.eq.s32.totalorder %s11, 1
    %p113 = scmp.ne.s32.totalorder %s108, %s110
    %p114 = scmp.eq.s32.totalorder %s11, 0
    %p115 = por %p113, %p114
    %p116 = scmp.ne.s32.totalorder %s108, %s110
    %p117 = scmp.eq.s32.totalorder %s16, 1
    %p118 = por %p116, %p117
    %p119 = scmp.ne.s32.totalorder %s110, %s111
    %p120 = scmp.eq.s32.totalorder %s16, 0
    %p121 = por %p119, %p120
    %p122 = scmp.ne.s32.totalorder %s110, %s111
    %p123 = scmp.eq.s32.totalorder %s17, 1
    %p124 = por %p122, %p123
    %p126 = scmp.ne.s32.totalorder %s111, %s125
    %p127 = scmp.eq.s32.totalorder %s17, 0
    %p128 = por %p126, %p127
    %s129 = ssub.s32 %s11, %s18
    %p130 = scmp.eq.s32.totalorder %s129, 0
    %s132 = sadd.s32 %s131, 1
    %s133 = scalar_select %p130, %s131, %s132
    %p136 = pneg %p130
    %p137 = scmp.eq.s32.totalorder %s11, 1
    %p138 = por %p136, %p137
    %p139 = scmp.ne.s32.totalorder %s131, %s134
    %p140 = scmp.eq.s32.totalorder %s11, 0
    %p141 = por %p139, %p140
    %p142 = scmp.ne.s32.totalorder %s131, %s134
    %p143 = scmp.eq.s32.totalorder %s16, 1
    %p144 = por %p142, %p143
    %p145 = scmp.ne.s32.totalorder %s134, %s135
    %p146 = scmp.eq.s32.totalorder %s16, 0
    %p147 = por %p145, %p146
    %p148 = scmp.ne.s32.totalorder %s134, %s135
    %p149 = scmp.eq.s32.totalorder %s17, 1
    %p150 = por %p148, %p149
    %p152 = scmp.ne.s32.totalorder %s135, %s151
    %p153 = scmp.eq.s32.totalorder %s17, 0
    %p154 = por %p152, %p153
    %p155 = scmp.le.s32.totalorder 1, %s11
    %p156 = scmp.lt.s32.totalorder %s11, 3
    %p157 = pnand %p155, %p156
    %p158 = pneg %p157
    // Predicated region
    $region9: #{tpu_custom_call.1} parent=5 // pred_check
      _
    $region10: #{tpu_custom_call.1} parent=5 // pred_check_branch
      %160 = sbr.rel (%p157) target = $region12
    $region11: #{tpu_custom_call.1} parent=5 // pred_region
      %s161 = ssub.s32 %s11, 1
      // Predicated region
      $region13: #{tpu_custom_call.1} parent=11 // pred_check
        %p162 = pneg %p58
      $region14: #{tpu_custom_call.1} parent=11 // pred_check_branch
        %164 = sbr.rel (%p162) target = $region16
      $region15: #{tpu_custom_call.1} parent=11 // pred_region
        _
      $region16: #{tpu_custom_call.1} parent=11 // pred_fallthru
        _
      // Predicated region
      $region17: #{tpu_custom_call.1} parent=11 // pred_check
        %p165 = pneg %p79
      $region18: #{tpu_custom_call.1} parent=11 // pred_check_branch
        %167 = sbr.rel (%p165) target = $region20
      $region19: #{tpu_custom_call.1} parent=11 // pred_region
        _
      $region20: #{tpu_custom_call.1} parent=11 // pred_fallthru
        _
      // Predicated region
      $region21: #{tpu_custom_call.1} parent=11 // pred_check
        %p168 = pneg %p100
      $region22: #{tpu_custom_call.1} parent=11 // pred_check_branch
        %170 = sbr.rel (%p168) target = $region24
      $region23: #{tpu_custom_call.1} parent=11 // pred_region
        _
      $region24: #{tpu_custom_call.1} parent=11 // pred_fallthru
        _
      // Predicated region
      $region25: #{tpu_custom_call.1} parent=11 // pred_check
        %p171 = pneg %p121
      $region26: #{tpu_custom_call.1} parent=11 // pred_check_branch
        %173 = sbr.rel (%p171) target = $region28
      $region27: #{tpu_custom_call.1} parent=11 // pred_region
        _
      $region28: #{tpu_custom_call.1} parent=11 // pred_fallthru
        _
    $region12: #{tpu_custom_call.1} parent=5 // pred_fallthru
      _
    %p174 = scmp.lt.s32.totalorder %s11, 2
    // Predicated region
    $region29: #{tpu_custom_call.1} parent=5 // pred_check
      %p175 = pneg %p174
    $region30: #{tpu_custom_call.1} parent=5 // pred_check_branch
      %177 = sbr.rel (%p175) target = $region32
    $region31: #{tpu_custom_call.1} parent=5 // pred_region
      // Predicated region
      $region33: #{tpu_custom_call.1} parent=31 // pred_check
        %p178 = pneg %p31
      $region34: #{tpu_custom_call.1} parent=31 // pred_check_branch
        %180 = sbr.rel (%p178) target = $region36
      $region35: #{tpu_custom_call.1} parent=31 // pred_region
        %s181 = smul.u32 32, %s11
        %p182 = scmp.lt.s32.totalorder %s181, 63
        %s183 = scalar_select %p182, %s181, 63
        %s184 = smul.addr %s183, 8
        %s185 = scalar_lea.vmem %s0, %s184
        %s186 = smul.u32 32, %s11
      $region36: #{tpu_custom_call.1} parent=31 // pred_fallthru
        _
    $region32: #{tpu_custom_call.1} parent=5 // pred_fallthru
      _
    %p187 = scmp.le.s32.totalorder 1, %s11
    %p188 = scmp.lt.s32.totalorder %s11, 3
    %p189 = pnand %p187, %p188
    %p190 = pneg %p189
    // Predicated region
    $region37: #{tpu_custom_call.1} parent=5 // pred_check
      _
    $region38: #{tpu_custom_call.1} parent=5 // pred_check_branch
      %192 = sbr.rel (%p189) target = $region40
    $region39: #{tpu_custom_call.1} parent=5 // pred_region
      %s193 = ssub.s32 %s11, 1
      %s194 = smul.u32 32, %s16
      %p195 = scmp.lt.s32.totalorder %s194, 63
      %s196 = scalar_select %p195, %s194, 63
      %s197 = smul.addr %s196, 8
      %s198 = scalar_lea.vmem %s0, %s197
      %p199 = pneg %p37
      %p200 = pneg %p34
      %p201 = pneg %p58
      %p202 = pneg %p55
      %p203 = pneg %p79
      %p204 = pneg %p76
      %p205 = pneg %p100
      %p206 = pneg %p97
      %p207 = pneg %p121
      %p208 = pneg %p118
      %p209 = pneg %p147
      %p210 = pneg %p144
      %s211 = smul.u32 32, %s16
      %p212 = scmp.lt.s32.totalorder %s211, 63
      %s213 = scalar_select %p212, %s211, 63
      %s214 = smul.addr %s213, 8
      %s215 = scalar_lea.vmem %s5, %s214
      %s216 = smul.u32 32, %s16
      %p217 = scmp.lt.s32.totalorder %s216, 63
      %s218 = scalar_select %p217, %s216, 63
      %s219 = smul.addr %s218, 8
      %s220 = scalar_lea.vmem %s0, %s219
      %s221 = smul.u32 32, %s16
      %s222 = smul.u32 32, %s16
      %p223 = scmp.lt.s32.totalorder %s222, 63
      %s224 = scalar_select %p223, %s222, 63
      %s225 = smul.addr %s224, 8
      %s226 = scalar_lea.vmem %s5, %s225
      %s227 = smul.u32 32, %s16
      %v228 = vld [vmem:[%s220] sm:$0xff]
      %v229 = vld [vmem:[%s220 + $0x8] sm:$0xff]
      %v230 = vld [vmem:[%s220 + $0x10] sm:$0xff]
      %v231 = vld [vmem:[%s220 + $0x18] sm:$0xff]
      %v232 = vld [vmem:[%s220 + $0x20] sm:$0xff]
      %v233 = vld [vmem:[%s220 + $0x28] sm:$0xff]
      %v234 = vld [vmem:[%s220 + $0x30] sm:$0xff]
      %v235 = vld [vmem:[%s220 + $0x38] sm:$0xff]
      %v236 = vld [vmem:[%s220 + $0x40] sm:$0xff]
      %v237 = vld [vmem:[%s220 + $0x48] sm:$0xff]
      %v238 = vld [vmem:[%s220 + $0x50] sm:$0xff]
      %v239 = vld [vmem:[%s220 + $0x58] sm:$0xff]
      %v240 = vld [vmem:[%s220 + $0x60] sm:$0xff]
      %v241 = vld [vmem:[%s220 + $0x68] sm:$0xff]
      %v242 = vld [vmem:[%s220 + $0x70] sm:$0xff]
      %v243 = vld [vmem:[%s220 + $0x78] sm:$0xff]
      %v244 = vld [vmem:[%s220 + $0x80] sm:$0xff]
      %v245 = vld [vmem:[%s220 + $0x88] sm:$0xff]
      %v246 = vld [vmem:[%s220 + $0x90] sm:$0xff]
      %v247 = vld [vmem:[%s220 + $0x98] sm:$0xff]
      %v248 = vld [vmem:[%s220 + $0xa0] sm:$0xff]
      %v249 = vld [vmem:[%s220 + $0xa8] sm:$0xff]
      %v250 = vld [vmem:[%s220 + $0xb0] sm:$0xff]
      %v251 = vld [vmem:[%s220 + $0xb8] sm:$0xff]
      %v252 = vld [vmem:[%s220 + $0xc0] sm:$0xff]
      %v253 = vld [vmem:[%s220 + $0xc8] sm:$0xff]
      %v254 = vld [vmem:[%s220 + $0xd0] sm:$0xff]
      %v255 = vld [vmem:[%s220 + $0xd8] sm:$0xff]
      %v256 = vld [vmem:[%s220 + $0xe0] sm:$0xff]
      %v257 = vld [vmem:[%s220 + $0xe8] sm:$0xff]
      %v258 = vld [vmem:[%s220 + $0xf0] sm:$0xff]
      %v259 = vld [vmem:[%s220 + $0xf8] sm:$0xff]
      %v260 = vld [vmem:[%s1] sm:$0xff]
      %v261 = vld [vmem:[%s1 + $0x8] sm:$0xff]
      %v262 = vld [vmem:[%s2] sm:$0x1]
      %v264 = vlaneseq
      %v265 = vshrl.u32 %v264, 7
      %v266 = vsub.s32 0, %v265
      %v267 = vrot.slane %v262, %v266
      %vm269 = vcmask 130048
      %v271 = vsel %vm269, %v228, 0
      %v274 = vsel %vm269, %v229, 0
      %v277 = vsel %vm269, %v230, 0
      %v280 = vsel %vm269, %v231, 0
      %v283 = vsel %vm269, %v232, 0
      %v286 = vsel %vm269, %v233, 0
      %v289 = vsel %vm269, %v234, 0
      %v292 = vsel %vm269, %v235, 0
      %v295 = vsel %vm269, %v236, 0
      %v298 = vsel %vm269, %v237, 0
      %v301 = vsel %vm269, %v238, 0
      %v304 = vsel %vm269, %v239, 0
      %v307 = vsel %vm269, %v240, 0
      %v310 = vsel %vm269, %v241, 0
      %v313 = vsel %vm269, %v242, 0
      %v316 = vsel %vm269, %v243, 0
      %v319 = vsel %vm269, %v244, 0
      %v322 = vsel %vm269, %v245, 0
      %v325 = vsel %vm269, %v246, 0
      %v328 = vsel %vm269, %v247, 0
      %v331 = vsel %vm269, %v248, 0
      %v334 = vsel %vm269, %v249, 0
      %v337 = vsel %vm269, %v250, 0
      %v340 = vsel %vm269, %v251, 0
      %v343 = vsel %vm269, %v252, 0
      %v346 = vsel %vm269, %v253, 0
      %v349 = vsel %vm269, %v254, 0
      %v352 = vsel %vm269, %v255, 0
      %v355 = vsel %vm269, %v256, 0
      %v358 = vsel %vm269, %v257, 0
      %v361 = vsel %vm269, %v258, 0
      %v364 = vsel %vm269, %v259, 0
      %366 = vmatprep.subr.mxu0 0.0
      %367 = vmatpush1.msra.mxu0 0.0
      %368 = vmatprep.subr.mxu0 0.0
      %369 = vmatpush1.msra.mxu0 0.0
      %370 = vmatprep.subr.mxu0 0.0
      %371 = vmatpush1.msra.mxu0 0.0
      %372 = vmatprep.subr.mxu0 0.0
      %373 = vmatpush1.msra.mxu0 0.0
      %374 = vmatprep.subr.mxu0 0.0
      %375 = vmatpush1.msra.mxu0 0.0
      %376 = vmatprep.subr.mxu0 0.0
      %377 = vmatpush1.msra.mxu0 0.0
      %378 = vmatprep.subr.mxu0 0.0
      %379 = vmatpush1.msra.mxu0 0.0
      %380 = vmatprep.subr.mxu0 0.0
      %381 = vmatpush1.msra.mxu0 0.0
      %382 = vmatprep.subr.mxu0 0.0
      %383 = vmatpush1.msra.mxu0 0.0
      %384 = vmatprep.subr.mxu0 0.0
      %385 = vmatpush1.msra.mxu0 0.0
      %386 = vmatprep.subr.mxu0 0.0
      %387 = vmatpush1.msra.mxu0 0.0
      %388 = vmatprep.subr.mxu0 0.0
      %389 = vmatpush1.msra.mxu0 0.0
      %390 = vmatprep.subr.mxu0 0.0
      %391 = vmatpush1.msra.mxu0 0.0
      %392 = vmatprep.subr.mxu0 0.0
      %393 = vmatpush1.msra.mxu0 0.0
      %394 = vmatprep.subr.mxu0 0.0
      %395 = vmatpush1.msra.mxu0 %v261
      %396 = vmatprep.subr.mxu0 0.0
      %397 = vmatpush1.msra.mxu0 %v260
      %398 = vmatprep.subr.mxu0 0.0
      %399 = vmatpush2.msra.mxu0 0.0
      %400 = vmatprep.subr.mxu0 0.0
      %401 = vmatpush2.msra.mxu0 0.0
      %402 = vmatprep.subr.mxu0 0.0
      %403 = vmatpush2.msra.mxu0 0.0
      %404 = vmatprep.subr.mxu0 0.0
      %405 = vmatpush2.msra.mxu0 0.0
      %406 = vmatprep.subr.mxu0 0.0
      %407 = vmatpush2.msra.mxu0 0.0
      %408 = vmatprep.subr.mxu0 0.0
      %409 = vmatpush2.msra.mxu0 0.0
      %410 = vmatprep.subr.mxu0 0.0
      %411 = vmatpush2.msra.mxu0 0.0
      %412 = vmatprep.subr.mxu0 0.0
      %413 = vmatpush2.msra.mxu0 0.0
      %414 = vmatprep.subr.mxu0 0.0
      %415 = vmatpush2.msra.mxu0 0.0
      %416 = vmatprep.subr.mxu0 0.0
      %417 = vmatpush2.msra.mxu0 0.0
      %418 = vmatprep.subr.mxu0 0.0
      %419 = vmatpush2.msra.mxu0 0.0
      %420 = vmatprep.subr.mxu0 0.0
      %421 = vmatpush2.msra.mxu0 0.0
      %422 = vmatprep.subr.mxu0 0.0
      %423 = vmatpush2.msra.mxu0 0.0
      %424 = vmatprep.subr.mxu0 0.0
      %425 = vmatpush2.msra.mxu0 0.0
      %426 = vmatprep.subr.mxu0 0.0
      %427 = vmatpush2.msra.mxu0 0.0
      %428 = vmatprep.subr.mxu0 0.0
      %429 = vmatpush2.msra.mxu0 0.0
      %430 = vmatprep.mubr.f32.mxu0 0.0
      %431 = vmatmul.mubr.f32.gmra.mxu0 %v271
      %v432 = vpop.f32.mrf.mxu0
      %v433 = vadd.f32 %v267, %v432
      %v434 = vpop.f32.mrf.mxu0
      %435 = vmatprep.mubr.f32.mxu0 0.0
      %436 = vmatmul.mubr.f32.gmra.mxu0 %v274
      %v437 = vpop.f32.mrf.mxu0
      %v438 = vadd.f32 %v267, %v437
      %v439 = vpop.f32.mrf.mxu0
      %440 = vmatprep.mubr.f32.mxu0 0.0
      %441 = vmatmul.mubr.f32.gmra.mxu0 %v277
      %v442 = vpop.f32.mrf.mxu0
      %v443 = vadd.f32 %v267, %v442
      %v444 = vpop.f32.mrf.mxu0
      %445 = vmatprep.mubr.f32.mxu0 0.0
      %446 = vmatmul.mubr.f32.gmra.mxu0 %v280
      %v447 = vpop.f32.mrf.mxu0
      %v448 = vadd.f32 %v267, %v447
      %v449 = vpop.f32.mrf.mxu0
      %450 = vmatprep.mubr.f32.mxu0 0.0
      %451 = vmatmul.mubr.f32.gmra.mxu0 %v283
      %v452 = vpop.f32.mrf.mxu0
      %v453 = vadd.f32 %v267, %v452
      %v454 = vpop.f32.mrf.mxu0
      %455 = vmatprep.mubr.f32.mxu0 0.0
      %456 = vmatmul.mubr.f32.gmra.mxu0 %v286
      %v457 = vpop.f32.mrf.mxu0
      %v458 = vadd.f32 %v267, %v457
      %v459 = vpop.f32.mrf.mxu0
      %460 = vmatprep.mubr.f32.mxu0 0.0
      %461 = vmatmul.mubr.f32.gmra.mxu0 %v289
      %v462 = vpop.f32.mrf.mxu0
      %v463 = vadd.f32 %v267, %v462
      %v464 = vpop.f32.mrf.mxu0
      %465 = vmatprep.mubr.f32.mxu0 0.0
      %466 = vmatmul.mubr.f32.gmra.mxu0 %v292
      %v467 = vpop.f32.mrf.mxu0
      %v468 = vadd.f32 %v267, %v467
      %v469 = vpop.f32.mrf.mxu0
      %470 = vmatprep.mubr.f32.mxu0 0.0
      %471 = vmatmul.mubr.f32.gmra.mxu0 %v295
      %v472 = vpop.f32.mrf.mxu0
      %v473 = vadd.f32 %v267, %v472
      %v474 = vpop.f32.mrf.mxu0
      %475 = vmatprep.mubr.f32.mxu0 0.0
      %476 = vmatmul.mubr.f32.gmra.mxu0 %v298
      %v477 = vpop.f32.mrf.mxu0
      %v478 = vadd.f32 %v267, %v477
      %v479 = vpop.f32.mrf.mxu0
      %480 = vmatprep.mubr.f32.mxu0 0.0
      %481 = vmatmul.mubr.f32.gmra.mxu0 %v301
      %v482 = vpop.f32.mrf.mxu0
      %v483 = vadd.f32 %v267, %v482
      %v484 = vpop.f32.mrf.mxu0
      %485 = vmatprep.mubr.f32.mxu0 0.0
      %486 = vmatmul.mubr.f32.gmra.mxu0 %v304
      %v487 = vpop.f32.mrf.mxu0
      %v488 = vadd.f32 %v267, %v487
      %v489 = vpop.f32.mrf.mxu0
      %490 = vmatprep.mubr.f32.mxu0 0.0
      %491 = vmatmul.mubr.f32.gmra.mxu0 %v307
      %v492 = vpop.f32.mrf.mxu0
      %v493 = vadd.f32 %v267, %v492
      %v494 = vpop.f32.mrf.mxu0
      %495 = vmatprep.mubr.f32.mxu0 0.0
      %496 = vmatmul.mubr.f32.gmra.mxu0 %v310
      %v497 = vpop.f32.mrf.mxu0
      %v498 = vadd.f32 %v267, %v497
      %v499 = vpop.f32.mrf.mxu0
      %500 = vmatprep.mubr.f32.mxu0 0.0
      %501 = vmatmul.mubr.f32.gmra.mxu0 %v313
      %v502 = vpop.f32.mrf.mxu0
      %v503 = vadd.f32 %v267, %v502
      %v504 = vpop.f32.mrf.mxu0
      %505 = vmatprep.mubr.f32.mxu0 0.0
      %506 = vmatmul.mubr.f32.gmra.mxu0 %v316
      %v507 = vpop.f32.mrf.mxu0
      %v508 = vadd.f32 %v267, %v507
      %v509 = vpop.f32.mrf.mxu0
      %510 = vmatprep.mubr.f32.mxu0 0.0
      %511 = vmatmul.mubr.f32.gmra.mxu0 %v319
      %v512 = vpop.f32.mrf.mxu0
      %v513 = vadd.f32 %v267, %v512
      %v514 = vpop.f32.mrf.mxu0
      %515 = vmatprep.mubr.f32.mxu0 0.0
      %516 = vmatmul.mubr.f32.gmra.mxu0 %v322
      %v517 = vpop.f32.mrf.mxu0
      %v518 = vadd.f32 %v267, %v517
      %v519 = vpop.f32.mrf.mxu0
      %520 = vmatprep.mubr.f32.mxu0 0.0
      %521 = vmatmul.mubr.f32.gmra.mxu0 %v325
      %v522 = vpop.f32.mrf.mxu0
      %v523 = vadd.f32 %v267, %v522
      %v524 = vpop.f32.mrf.mxu0
      %525 = vmatprep.mubr.f32.mxu0 0.0
      %526 = vmatmul.mubr.f32.gmra.mxu0 %v328
      %v527 = vpop.f32.mrf.mxu0
      %v528 = vadd.f32 %v267, %v527
      %v529 = vpop.f32.mrf.mxu0
      %530 = vmatprep.mubr.f32.mxu0 0.0
      %531 = vmatmul.mubr.f32.gmra.mxu0 %v331
      %v532 = vpop.f32.mrf.mxu0
      %v533 = vadd.f32 %v267, %v532
      %v534 = vpop.f32.mrf.mxu0
      %535 = vmatprep.mubr.f32.mxu0 0.0
      %536 = vmatmul.mubr.f32.gmra.mxu0 %v334
      %v537 = vpop.f32.mrf.mxu0
      %v538 = vadd.f32 %v267, %v537
      %v539 = vpop.f32.mrf.mxu0
      %540 = vmatprep.mubr.f32.mxu0 0.0
      %541 = vmatmul.mubr.f32.gmra.mxu0 %v337
      %v542 = vpop.f32.mrf.mxu0
      %v543 = vadd.f32 %v267, %v542
      %v544 = vpop.f32.mrf.mxu0
      %545 = vmatprep.mubr.f32.mxu0 0.0
      %546 = vmatmul.mubr.f32.gmra.mxu0 %v340
      %v547 = vpop.f32.mrf.mxu0
      %v548 = vadd.f32 %v267, %v547
      %v549 = vpop.f32.mrf.mxu0
      %550 = vmatprep.mubr.f32.mxu0 0.0
      %551 = vmatmul.mubr.f32.gmra.mxu0 %v343
      %v552 = vpop.f32.mrf.mxu0
      %v553 = vadd.f32 %v267, %v552
      %v554 = vpop.f32.mrf.mxu0
      %555 = vmatprep.mubr.f32.mxu0 0.0
      %556 = vmatmul.mubr.f32.gmra.mxu0 %v346
      %v557 = vpop.f32.mrf.mxu0
      %v558 = vadd.f32 %v267, %v557
      %v559 = vpop.f32.mrf.mxu0
      %560 = vmatprep.mubr.f32.mxu0 0.0
      %561 = vmatmul.mubr.f32.gmra.mxu0 %v349
      %v562 = vpop.f32.mrf.mxu0
      %v563 = vadd.f32 %v267, %v562
      %v564 = vpop.f32.mrf.mxu0
      %565 = vmatprep.mubr.f32.mxu0 0.0
      %566 = vmatmul.mubr.f32.gmra.mxu0 %v352
      %v567 = vpop.f32.mrf.mxu0
      %v568 = vadd.f32 %v267, %v567
      %v569 = vpop.f32.mrf.mxu0
      %570 = vmatprep.mubr.f32.mxu0 0.0
      %571 = vmatmul.mubr.f32.gmra.mxu0 %v355
      %v572 = vpop.f32.mrf.mxu0
      %v573 = vadd.f32 %v267, %v572
      %v574 = vpop.f32.mrf.mxu0
      %575 = vmatprep.mubr.f32.mxu0 0.0
      %576 = vmatmul.mubr.f32.gmra.mxu0 %v358
      %v577 = vpop.f32.mrf.mxu0
      %v578 = vadd.f32 %v267, %v577
      %v579 = vpop.f32.mrf.mxu0
      %580 = vmatprep.mubr.f32.mxu0 0.0
      %581 = vmatmul.mubr.f32.gmra.mxu0 %v361
      %v582 = vpop.f32.mrf.mxu0
      %v583 = vadd.f32 %v267, %v582
      %v584 = vpop.f32.mrf.mxu0
      %585 = vmatprep.mubr.f32.mxu0 0.0
      %586 = vmatmul.mubr.f32.gmra.mxu0 %v364
      %v587 = vpop.f32.mrf.mxu0
      %v588 = vadd.f32 %v267, %v587
      %v589 = vpop.f32.mrf.mxu0
      %590 = vdwg.mxu0
      %v591 = vmax.f32 %v433, 0.0
      %v592 = vmax.f32 %v438, 0.0
      %v593 = vmax.f32 %v443, 0.0
      %v594 = vmax.f32 %v448, 0.0
      %v595 = vmax.f32 %v453, 0.0
      %v596 = vmax.f32 %v458, 0.0
      %v597 = vmax.f32 %v463, 0.0
      %v598 = vmax.f32 %v468, 0.0
      %v599 = vmax.f32 %v473, 0.0
      %v600 = vmax.f32 %v478, 0.0
      %v601 = vmax.f32 %v483, 0.0
      %v602 = vmax.f32 %v488, 0.0
      %v603 = vmax.f32 %v493, 0.0
      %v604 = vmax.f32 %v498, 0.0
      %v605 = vmax.f32 %v503, 0.0
      %v606 = vmax.f32 %v508, 0.0
      %v607 = vmax.f32 %v513, 0.0
      %v608 = vmax.f32 %v518, 0.0
      %v609 = vmax.f32 %v523, 0.0
      %v610 = vmax.f32 %v528, 0.0
      %v611 = vmax.f32 %v533, 0.0
      %v612 = vmax.f32 %v538, 0.0
      %v613 = vmax.f32 %v543, 0.0
      %v614 = vmax.f32 %v548, 0.0
      %v615 = vmax.f32 %v553, 0.0
      %v616 = vmax.f32 %v558, 0.0
      %v617 = vmax.f32 %v563, 0.0
      %v618 = vmax.f32 %v568, 0.0
      %v619 = vmax.f32 %v573, 0.0
      %v620 = vmax.f32 %v578, 0.0
      %v621 = vmax.f32 %v583, 0.0
      %v622 = vmax.f32 %v588, 0.0
      %v623 = vld [vmem:[%s3] sm:$0xff]
      %v624 = vld [vmem:[%s3 + $0x8] sm:$0xff]
      %v625 = vld [vmem:[%s3 + $0x10] sm:$0xff]
      %v626 = vld [vmem:[%s3 + $0x18] sm:$0xff]
      %v627 = vld [vmem:[%s3 + $0x20] sm:$0xff]
      %v628 = vld [vmem:[%s3 + $0x28] sm:$0xff]
      %v629 = vld [vmem:[%s3 + $0x30] sm:$0xff]
      %v630 = vld [vmem:[%s3 + $0x38] sm:$0xff]
      %v631 = vld [vmem:[%s3 + $0x40] sm:$0xff]
      %v632 = vld [vmem:[%s3 + $0x48] sm:$0xff]
      %v633 = vld [vmem:[%s3 + $0x50] sm:$0xff]
      %v634 = vld [vmem:[%s3 + $0x58] sm:$0xff]
      %v635 = vld [vmem:[%s3 + $0x60] sm:$0xff]
      %v636 = vld [vmem:[%s3 + $0x68] sm:$0xff]
      %v637 = vld [vmem:[%s3 + $0x70] sm:$0xff]
      %v638 = vld [vmem:[%s3 + $0x78] sm:$0xff]
      %v639 = vld [vmem:[%s4] sm:$0x1]
      %v641 = vlaneseq
      %v642 = vshrl.u32 %v641, 7
      %v643 = vsub.s32 0, %v642
      %v644 = vrot.slane %v639, %v643
      %646 = vmatprep.subr.mxu0 0.0
      %647 = vmatpush1.msra.mxu0 %v638
      %648 = vmatprep.subr.mxu0 0.0
      %649 = vmatpush1.msra.mxu0 %v637
      %650 = vmatprep.subr.mxu0 0.0
      %651 = vmatpush1.msra.mxu0 %v636
      %652 = vmatprep.subr.mxu0 0.0
      %653 = vmatpush1.msra.mxu0 %v635
      %654 = vmatprep.subr.mxu0 0.0
      %655 = vmatpush1.msra.mxu0 %v634
      %656 = vmatprep.subr.mxu0 0.0
      %657 = vmatpush1.msra.mxu0 %v633
      %658 = vmatprep.subr.mxu0 0.0
      %659 = vmatpush1.msra.mxu0 %v632
      %660 = vmatprep.subr.mxu0 0.0
      %661 = vmatpush1.msra.mxu0 %v631
      %662 = vmatprep.subr.mxu0 0.0
      %663 = vmatpush1.msra.mxu0 %v630
      %664 = vmatprep.subr.mxu0 0.0
      %665 = vmatpush1.msra.mxu0 %v629
      %666 = vmatprep.subr.mxu0 0.0
      %667 = vmatpush1.msra.mxu0 %v628
      %668 = vmatprep.subr.mxu0 0.0
      %669 = vmatpush1.msra.mxu0 %v627
      %670 = vmatprep.subr.mxu0 0.0
      %671 = vmatpush1.msra.mxu0 %v626
      %672 = vmatprep.subr.mxu0 0.0
      %673 = vmatpush1.msra.mxu0 %v625
      %674 = vmatprep.subr.mxu0 0.0
      %675 = vmatpush1.msra.mxu0 %v624
      %676 = vmatprep.subr.mxu0 0.0
      %677 = vmatpush1.msra.mxu0 %v623
      %678 = vmatprep.subr.mxu0 0.0
      %679 = vmatpush2.msra.mxu0 0.0
      %680 = vmatprep.subr.mxu0 0.0
      %681 = vmatpush2.msra.mxu0 0.0
      %682 = vmatprep.subr.mxu0 0.0
      %683 = vmatpush2.msra.mxu0 0.0
      %684 = vmatprep.subr.mxu0 0.0
      %685 = vmatpush2.msra.mxu0 0.0
      %686 = vmatprep.subr.mxu0 0.0
      %687 = vmatpush2.msra.mxu0 0.0
      %688 = vmatprep.subr.mxu0 0.0
      %689 = vmatpush2.msra.mxu0 0.0
      %690 = vmatprep.subr.mxu0 0.0
      %691 = vmatpush2.msra.mxu0 0.0
      %692 = vmatprep.subr.mxu0 0.0
      %693 = vmatpush2.msra.mxu0 0.0
      %694 = vmatprep.subr.mxu0 0.0
      %695 = vmatpush2.msra.mxu0 0.0
      %696 = vmatprep.subr.mxu0 0.0
      %697 = vmatpush2.msra.mxu0 0.0
      %698 = vmatprep.subr.mxu0 0.0
      %699 = vmatpush2.msra.mxu0 0.0
      %700 = vmatprep.subr.mxu0 0.0
      %701 = vmatpush2.msra.mxu0 0.0
      %702 = vmatprep.subr.mxu0 0.0
      %703 = vmatpush2.msra.mxu0 0.0
      %704 = vmatprep.subr.mxu0 0.0
      %705 = vmatpush2.msra.mxu0 0.0
      %706 = vmatprep.subr.mxu0 0.0
      %707 = vmatpush2.msra.mxu0 0.0
      %708 = vmatprep.subr.mxu0 0.0
      %709 = vmatpush2.msra.mxu0 0.0
      %710 = vmatprep.mubr.f32.mxu0 0.0
      %711 = vmatmul.mubr.f32.gmra.mxu0 %v591
      %v712 = vpop.f32.mrf.mxu0
      %v713 = vadd.f32 %v644, %v712
      %v714 = vpop.f32.mrf.mxu0
      %715 = vmatprep.mubr.f32.mxu0 0.0
      %716 = vmatmul.mubr.f32.gmra.mxu0 %v592
      %v717 = vpop.f32.mrf.mxu0
      %v718 = vadd.f32 %v644, %v717
      %v719 = vpop.f32.mrf.mxu0
      %720 = vmatprep.mubr.f32.mxu0 0.0
      %721 = vmatmul.mubr.f32.gmra.mxu0 %v593
      %v722 = vpop.f32.mrf.mxu0
      %v723 = vadd.f32 %v644, %v722
      %v724 = vpop.f32.mrf.mxu0
      %725 = vmatprep.mubr.f32.mxu0 0.0
      %726 = vmatmul.mubr.f32.gmra.mxu0 %v594
      %v727 = vpop.f32.mrf.mxu0
      %v728 = vadd.f32 %v644, %v727
      %v729 = vpop.f32.mrf.mxu0
      %730 = vmatprep.mubr.f32.mxu0 0.0
      %731 = vmatmul.mubr.f32.gmra.mxu0 %v595
      %v732 = vpop.f32.mrf.mxu0
      %v733 = vadd.f32 %v644, %v732
      %v734 = vpop.f32.mrf.mxu0
      %735 = vmatprep.mubr.f32.mxu0 0.0
      %736 = vmatmul.mubr.f32.gmra.mxu0 %v596
      %v737 = vpop.f32.mrf.mxu0
      %v738 = vadd.f32 %v644, %v737
      %v739 = vpop.f32.mrf.mxu0
      %740 = vmatprep.mubr.f32.mxu0 0.0
      %741 = vmatmul.mubr.f32.gmra.mxu0 %v597
      %v742 = vpop.f32.mrf.mxu0
      %v743 = vadd.f32 %v644, %v742
      %v744 = vpop.f32.mrf.mxu0
      %745 = vmatprep.mubr.f32.mxu0 0.0
      %746 = vmatmul.mubr.f32.gmra.mxu0 %v598
      %v747 = vpop.f32.mrf.mxu0
      %v748 = vadd.f32 %v644, %v747
      %v749 = vpop.f32.mrf.mxu0
      %750 = vmatprep.mubr.f32.mxu0 0.0
      %751 = vmatmul.mubr.f32.gmra.mxu0 %v599
      %v752 = vpop.f32.mrf.mxu0
      %v753 = vadd.f32 %v644, %v752
      %v754 = vpop.f32.mrf.mxu0
      %755 = vmatprep.mubr.f32.mxu0 0.0
      %756 = vmatmul.mubr.f32.gmra.mxu0 %v600
      %v757 = vpop.f32.mrf.mxu0
      %v758 = vadd.f32 %v644, %v757
      %v759 = vpop.f32.mrf.mxu0
      %760 = vmatprep.mubr.f32.mxu0 0.0
      %761 = vmatmul.mubr.f32.gmra.mxu0 %v601
      %v762 = vpop.f32.mrf.mxu0
      %v763 = vadd.f32 %v644, %v762
      %v764 = vpop.f32.mrf.mxu0
      %765 = vmatprep.mubr.f32.mxu0 0.0
      %766 = vmatmul.mubr.f32.gmra.mxu0 %v602
      %v767 = vpop.f32.mrf.mxu0
      %v768 = vadd.f32 %v644, %v767
      %v769 = vpop.f32.mrf.mxu0
      %770 = vmatprep.mubr.f32.mxu0 0.0
      %771 = vmatmul.mubr.f32.gmra.mxu0 %v603
      %v772 = vpop.f32.mrf.mxu0
      %v773 = vadd.f32 %v644, %v772
      %v774 = vpop.f32.mrf.mxu0
      %775 = vmatprep.mubr.f32.mxu0 0.0
      %776 = vmatmul.mubr.f32.gmra.mxu0 %v604
      %v777 = vpop.f32.mrf.mxu0
      %v778 = vadd.f32 %v644, %v777
      %v779 = vpop.f32.mrf.mxu0
      %780 = vmatprep.mubr.f32.mxu0 0.0
      %781 = vmatmul.mubr.f32.gmra.mxu0 %v605
      %v782 = vpop.f32.mrf.mxu0
      %v783 = vadd.f32 %v644, %v782
      %v784 = vpop.f32.mrf.mxu0
      %785 = vmatprep.mubr.f32.mxu0 0.0
      %786 = vmatmul.mubr.f32.gmra.mxu0 %v606
      %v787 = vpop.f32.mrf.mxu0
      %v788 = vadd.f32 %v644, %v787
      %v789 = vpop.f32.mrf.mxu0
      %790 = vmatprep.mubr.f32.mxu0 0.0
      %791 = vmatmul.mubr.f32.gmra.mxu0 %v607
      %v792 = vpop.f32.mrf.mxu0
      %v793 = vadd.f32 %v644, %v792
      %v794 = vpop.f32.mrf.mxu0
      %795 = vmatprep.mubr.f32.mxu0 0.0
      %796 = vmatmul.mubr.f32.gmra.mxu0 %v608
      %v797 = vpop.f32.mrf.mxu0
      %v798 = vadd.f32 %v644, %v797
      %v799 = vpop.f32.mrf.mxu0
      %800 = vmatprep.mubr.f32.mxu0 0.0
      %801 = vmatmul.mubr.f32.gmra.mxu0 %v609
      %v802 = vpop.f32.mrf.mxu0
      %v803 = vadd.f32 %v644, %v802
      %v804 = vpop.f32.mrf.mxu0
      %805 = vmatprep.mubr.f32.mxu0 0.0
      %806 = vmatmul.mubr.f32.gmra.mxu0 %v610
      %v807 = vpop.f32.mrf.mxu0
      %v808 = vadd.f32 %v644, %v807
      %v809 = vpop.f32.mrf.mxu0
      %810 = vmatprep.mubr.f32.mxu0 0.0
      %811 = vmatmul.mubr.f32.gmra.mxu0 %v611
      %v812 = vpop.f32.mrf.mxu0
      %v813 = vadd.f32 %v644, %v812
      %v814 = vpop.f32.mrf.mxu0
      %815 = vmatprep.mubr.f32.mxu0 0.0
      %816 = vmatmul.mubr.f32.gmra.mxu0 %v612
      %v817 = vpop.f32.mrf.mxu0
      %v818 = vadd.f32 %v644, %v817
      %v819 = vpop.f32.mrf.mxu0
      %820 = vmatprep.mubr.f32.mxu0 0.0
      %821 = vmatmul.mubr.f32.gmra.mxu0 %v613
      %v822 = vpop.f32.mrf.mxu0
      %v823 = vadd.f32 %v644, %v822
      %v824 = vpop.f32.mrf.mxu0
      %825 = vmatprep.mubr.f32.mxu0 0.0
      %826 = vmatmul.mubr.f32.gmra.mxu0 %v614
      %v827 = vpop.f32.mrf.mxu0
      %v828 = vadd.f32 %v644, %v827
      %v829 = vpop.f32.mrf.mxu0
      %830 = vmatprep.mubr.f32.mxu0 0.0
      %831 = vmatmul.mubr.f32.gmra.mxu0 %v615
      %v832 = vpop.f32.mrf.mxu0
      %v833 = vadd.f32 %v644, %v832
      %v834 = vpop.f32.mrf.mxu0
      %835 = vmatprep.mubr.f32.mxu0 0.0
      %836 = vmatmul.mubr.f32.gmra.mxu0 %v616
      %v837 = vpop.f32.mrf.mxu0
      %v838 = vadd.f32 %v644, %v837
      %v839 = vpop.f32.mrf.mxu0
      %840 = vmatprep.mubr.f32.mxu0 0.0
      %841 = vmatmul.mubr.f32.gmra.mxu0 %v617
      %v842 = vpop.f32.mrf.mxu0
      %v843 = vadd.f32 %v644, %v842
      %v844 = vpop.f32.mrf.mxu0
      %845 = vmatprep.mubr.f32.mxu0 0.0
      %846 = vmatmul.mubr.f32.gmra.mxu0 %v618
      %v847 = vpop.f32.mrf.mxu0
      %v848 = vadd.f32 %v644, %v847
      %v849 = vpop.f32.mrf.mxu0
      %850 = vmatprep.mubr.f32.mxu0 0.0
      %851 = vmatmul.mubr.f32.gmra.mxu0 %v619
      %v852 = vpop.f32.mrf.mxu0
      %v853 = vadd.f32 %v644, %v852
      %v854 = vpop.f32.mrf.mxu0
      %855 = vmatprep.mubr.f32.mxu0 0.0
      %856 = vmatmul.mubr.f32.gmra.mxu0 %v620
      %v857 = vpop.f32.mrf.mxu0
      %v858 = vadd.f32 %v644, %v857
      %v859 = vpop.f32.mrf.mxu0
      %860 = vmatprep.mubr.f32.mxu0 0.0
      %861 = vmatmul.mubr.f32.gmra.mxu0 %v621
      %v862 = vpop.f32.mrf.mxu0
      %v863 = vadd.f32 %v644, %v862
      %v864 = vpop.f32.mrf.mxu0
      %865 = vmatprep.mubr.f32.mxu0 0.0
      %866 = vmatmul.mubr.f32.gmra.mxu0 %v622
      %v867 = vpop.f32.mrf.mxu0
      %v868 = vadd.f32 %v644, %v867
      %v869 = vpop.f32.mrf.mxu0
      %870 = vdwg.mxu0
      %v871 = vsub.f32 0.0, %v713
      %v872 = vsub.f32 0.0, %v718
      %v873 = vsub.f32 0.0, %v723
      %v874 = vsub.f32 0.0, %v728
      %v875 = vsub.f32 0.0, %v733
      %v876 = vsub.f32 0.0, %v738
      %v877 = vsub.f32 0.0, %v743
      %v878 = vsub.f32 0.0, %v748
      %v879 = vsub.f32 0.0, %v753
      %v880 = vsub.f32 0.0, %v758
      %v881 = vsub.f32 0.0, %v763
      %v882 = vsub.f32 0.0, %v768
      %v883 = vsub.f32 0.0, %v773
      %v884 = vsub.f32 0.0, %v778
      %v885 = vsub.f32 0.0, %v783
      %v886 = vsub.f32 0.0, %v788
      %v887 = vsub.f32 0.0, %v793
      %v888 = vsub.f32 0.0, %v798
      %v889 = vsub.f32 0.0, %v803
      %v890 = vsub.f32 0.0, %v808
      %v891 = vsub.f32 0.0, %v813
      %v892 = vsub.f32 0.0, %v818
      %v893 = vsub.f32 0.0, %v823
      %v894 = vsub.f32 0.0, %v828
      %v895 = vsub.f32 0.0, %v833
      %v896 = vsub.f32 0.0, %v838
      %v897 = vsub.f32 0.0, %v843
      %v898 = vsub.f32 0.0, %v848
      %v899 = vsub.f32 0.0, %v853
      %v900 = vsub.f32 0.0, %v858
      %v901 = vsub.f32 0.0, %v863
      %v902 = vsub.f32 0.0, %v868
      %v903 = vmul.f32 %v871, 1.442695
      %v904 = vpow.pop %v903
      %v905 = vmul.f32 %v872, 1.442695
      %v906 = vpow.pop %v905
      %v907 = vmul.f32 %v873, 1.442695
      %v908 = vpow.pop %v907
      %v909 = vmul.f32 %v874, 1.442695
      %v910 = vpow.pop %v909
      %v911 = vmul.f32 %v875, 1.442695
      %v912 = vpow.pop %v911
      %v913 = vmul.f32 %v876, 1.442695
      %v914 = vpow.pop %v913
      %v915 = vmul.f32 %v877, 1.442695
      %v916 = vpow.pop %v915
      %v917 = vmul.f32 %v878, 1.442695
      %v918 = vpow.pop %v917
      %v919 = vmul.f32 %v879, 1.442695
      %v920 = vpow.pop %v919
      %v921 = vmul.f32 %v880, 1.442695
      %v922 = vpow.pop %v921
      %v923 = vmul.f32 %v881, 1.442695
      %v924 = vpow.pop %v923
      %v925 = vmul.f32 %v882, 1.442695
      %v926 = vpow.pop %v925
      %v927 = vmul.f32 %v883, 1.442695
      %v928 = vpow.pop %v927
      %v929 = vmul.f32 %v884, 1.442695
      %v930 = vpow.pop %v929
      %v931 = vmul.f32 %v885, 1.442695
      %v932 = vpow.pop %v931
      %v933 = vmul.f32 %v886, 1.442695
      %v934 = vpow.pop %v933
      %v935 = vmul.f32 %v887, 1.442695
      %v936 = vpow.pop %v935
      %v937 = vmul.f32 %v888, 1.442695
      %v938 = vpow.pop %v937
      %v939 = vmul.f32 %v889, 1.442695
      %v940 = vpow.pop %v939
      %v941 = vmul.f32 %v890, 1.442695
      %v942 = vpow.pop %v941
      %v943 = vmul.f32 %v891, 1.442695
      %v944 = vpow.pop %v943
      %v945 = vmul.f32 %v892, 1.442695
      %v946 = vpow.pop %v945
      %v947 = vmul.f32 %v893, 1.442695
      %v948 = vpow.pop %v947
      %v949 = vmul.f32 %v894, 1.442695
      %v950 = vpow.pop %v949
      %v951 = vmul.f32 %v895, 1.442695
      %v952 = vpow.pop %v951
      %v953 = vmul.f32 %v896, 1.442695
      %v954 = vpow.pop %v953
      %v955 = vmul.f32 %v897, 1.442695
      %v956 = vpow.pop %v955
      %v957 = vmul.f32 %v898, 1.442695
      %v958 = vpow.pop %v957
      %v959 = vmul.f32 %v899, 1.442695
      %v960 = vpow.pop %v959
      %v961 = vmul.f32 %v900, 1.442695
      %v962 = vpow.pop %v961
      %v963 = vmul.f32 %v901, 1.442695
      %v964 = vpow.pop %v963
      %v965 = vmul.f32 %v902, 1.442695
      %v966 = vpow.pop %v965
      %v967 = vadd.f32 %v904, 1.0
      %v968 = vadd.f32 %v906, 1.0
      %v969 = vadd.f32 %v908, 1.0
      %v970 = vadd.f32 %v910, 1.0
      %v971 = vadd.f32 %v912, 1.0
      %v972 = vadd.f32 %v914, 1.0
      %v973 = vadd.f32 %v916, 1.0
      %v974 = vadd.f32 %v918, 1.0
      %v975 = vadd.f32 %v920, 1.0
      %v976 = vadd.f32 %v922, 1.0
      %v977 = vadd.f32 %v924, 1.0
      %v978 = vadd.f32 %v926, 1.0
      %v979 = vadd.f32 %v928, 1.0
      %v980 = vadd.f32 %v930, 1.0
      %v981 = vadd.f32 %v932, 1.0
      %v982 = vadd.f32 %v934, 1.0
      %v983 = vadd.f32 %v936, 1.0
      %v984 = vadd.f32 %v938, 1.0
      %v985 = vadd.f32 %v940, 1.0
      %v986 = vadd.f32 %v942, 1.0
      %v987 = vadd.f32 %v944, 1.0
      %v988 = vadd.f32 %v946, 1.0
      %v989 = vadd.f32 %v948, 1.0
      %v990 = vadd.f32 %v950, 1.0
      %v991 = vadd.f32 %v952, 1.0
      %v992 = vadd.f32 %v954, 1.0
      %v993 = vadd.f32 %v956, 1.0
      %v994 = vadd.f32 %v958, 1.0
      %v995 = vadd.f32 %v960, 1.0
      %v996 = vadd.f32 %v962, 1.0
      %v997 = vadd.f32 %v964, 1.0
      %v998 = vadd.f32 %v966, 1.0
      %v999 = vrcp.pop %v967
      %v1000 = vmul.f32 1.0, %v999
      %v1001 = vrcp.pop %v968
      %v1002 = vmul.f32 1.0, %v1001
      %v1003 = vrcp.pop %v969
      %v1004 = vmul.f32 1.0, %v1003
      %v1005 = vrcp.pop %v970
      %v1006 = vmul.f32 1.0, %v1005
      %v1007 = vrcp.pop %v971
      %v1008 = vmul.f32 1.0, %v1007
      %v1009 = vrcp.pop %v972
      %v1010 = vmul.f32 1.0, %v1009
      %v1011 = vrcp.pop %v973
      %v1012 = vmul.f32 1.0, %v1011
      %v1013 = vrcp.pop %v974
      %v1014 = vmul.f32 1.0, %v1013
      %v1015 = vrcp.pop %v975
      %v1016 = vmul.f32 1.0, %v1015
      %v1017 = vrcp.pop %v976
      %v1018 = vmul.f32 1.0, %v1017
      %v1019 = vrcp.pop %v977
      %v1020 = vmul.f32 1.0, %v1019
      %v1021 = vrcp.pop %v978
      %v1022 = vmul.f32 1.0, %v1021
      %v1023 = vrcp.pop %v979
      %v1024 = vmul.f32 1.0, %v1023
      %v1025 = vrcp.pop %v980
      %v1026 = vmul.f32 1.0, %v1025
      %v1027 = vrcp.pop %v981
      %v1028 = vmul.f32 1.0, %v1027
      %v1029 = vrcp.pop %v982
      %v1030 = vmul.f32 1.0, %v1029
      %v1031 = vrcp.pop %v983
      %v1032 = vmul.f32 1.0, %v1031
      %v1033 = vrcp.pop %v984
      %v1034 = vmul.f32 1.0, %v1033
      %v1035 = vrcp.pop %v985
      %v1036 = vmul.f32 1.0, %v1035
      %v1037 = vrcp.pop %v986
      %v1038 = vmul.f32 1.0, %v1037
      %v1039 = vrcp.pop %v987
      %v1040 = vmul.f32 1.0, %v1039
      %v1041 = vrcp.pop %v988
      %v1042 = vmul.f32 1.0, %v1041
      %v1043 = vrcp.pop %v989
      %v1044 = vmul.f32 1.0, %v1043
      %v1045 = vrcp.pop %v990
      %v1046 = vmul.f32 1.0, %v1045
      %v1047 = vrcp.pop %v991
      %v1048 = vmul.f32 1.0, %v1047
      %v1049 = vrcp.pop %v992
      %v1050 = vmul.f32 1.0, %v1049
      %v1051 = vrcp.pop %v993
      %v1052 = vmul.f32 1.0, %v1051
      %v1053 = vrcp.pop %v994
      %v1054 = vmul.f32 1.0, %v1053
      %v1055 = vrcp.pop %v995
      %v1056 = vmul.f32 1.0, %v1055
      %v1057 = vrcp.pop %v996
      %v1058 = vmul.f32 1.0, %v1057
      %v1059 = vrcp.pop %v997
      %v1060 = vmul.f32 1.0, %v1059
      %v1061 = vrcp.pop %v998
      %v1062 = vmul.f32 1.0, %v1061
      %vm1063 = vcmask 64512
      %1064 = vst.msk [vmem:[%s226] sm:$0xff] %vm1063, %v1000
      %1065 = vst.msk [vmem:[%s226 + $0x8] sm:$0xff] %vm1063, %v1002
      %1066 = vst.msk [vmem:[%s226 + $0x10] sm:$0xff] %vm1063, %v1004
      %1067 = vst.msk [vmem:[%s226 + $0x18] sm:$0xff] %vm1063, %v1006
      %1068 = vst.msk [vmem:[%s226 + $0x20] sm:$0xff] %vm1063, %v1008
      %1069 = vst.msk [vmem:[%s226 + $0x28] sm:$0xff] %vm1063, %v1010
      %1070 = vst.msk [vmem:[%s226 + $0x30] sm:$0xff] %vm1063, %v1012
      %1071 = vst.msk [vmem:[%s226 + $0x38] sm:$0xff] %vm1063, %v1014
      %1072 = vst.msk [vmem:[%s226 + $0x40] sm:$0xff] %vm1063, %v1016
      %1073 = vst.msk [vmem:[%s226 + $0x48] sm:$0xff] %vm1063, %v1018
      %1074 = vst.msk [vmem:[%s226 + $0x50] sm:$0xff] %vm1063, %v1020
      %1075 = vst.msk [vmem:[%s226 + $0x58] sm:$0xff] %vm1063, %v1022
      %1076 = vst.msk [vmem:[%s226 + $0x60] sm:$0xff] %vm1063, %v1024
      %1077 = vst.msk [vmem:[%s226 + $0x68] sm:$0xff] %vm1063, %v1026
      %1078 = vst.msk [vmem:[%s226 + $0x70] sm:$0xff] %vm1063, %v1028
      %1079 = vst.msk [vmem:[%s226 + $0x78] sm:$0xff] %vm1063, %v1030
      %1080 = vst.msk [vmem:[%s226 + $0x80] sm:$0xff] %vm1063, %v1032
      %1081 = vst.msk [vmem:[%s226 + $0x88] sm:$0xff] %vm1063, %v1034
      %1082 = vst.msk [vmem:[%s226 + $0x90] sm:$0xff] %vm1063, %v1036
      %1083 = vst.msk [vmem:[%s226 + $0x98] sm:$0xff] %vm1063, %v1038
      %1084 = vst.msk [vmem:[%s226 + $0xa0] sm:$0xff] %vm1063, %v1040
      %1085 = vst.msk [vmem:[%s226 + $0xa8] sm:$0xff] %vm1063, %v1042
      %1086 = vst.msk [vmem:[%s226 + $0xb0] sm:$0xff] %vm1063, %v1044
      %1087 = vst.msk [vmem:[%s226 + $0xb8] sm:$0xff] %vm1063, %v1046
      %1088 = vst.msk [vmem:[%s226 + $0xc0] sm:$0xff] %vm1063, %v1048
      %1089 = vst.msk [vmem:[%s226 + $0xc8] sm:$0xff] %vm1063, %v1050
      %1090 = vst.msk [vmem:[%s226 + $0xd0] sm:$0xff] %vm1063, %v1052
      %1091 = vst.msk [vmem:[%s226 + $0xd8] sm:$0xff] %vm1063, %v1054
      %1092 = vst.msk [vmem:[%s226 + $0xe0] sm:$0xff] %vm1063, %v1056
      %1093 = vst.msk [vmem:[%s226 + $0xe8] sm:$0xff] %vm1063, %v1058
      %1094 = vst.msk [vmem:[%s226 + $0xf0] sm:$0xff] %vm1063, %v1060
      %1095 = vst.msk [vmem:[%s226 + $0xf8] sm:$0xff] %vm1063, %v1062
      %s1096 = smul.u32 32, %s16
      %p1097 = scmp.lt.s32.totalorder %s1096, 63
      %s1098 = scalar_select %p1097, %s1096, 63
      %s1099 = smul.addr %s1098, 8
      %s1100 = scalar_lea.vmem %s5, %s1099
      // Predicated region
      $region41: #{tpu_custom_call.1} parent=39 // pred_check
        %p1101 = pneg %p144
      $region42: #{tpu_custom_call.1} parent=39 // pred_check_branch
        %1103 = sbr.rel (%p1101) target = $region44
      $region43: #{tpu_custom_call.1} parent=39 // pred_region
        %s1104 = smul.u32 32, %s16
      $region44: #{tpu_custom_call.1} parent=39 // pred_fallthru
        _
    $region40: #{tpu_custom_call.1} parent=5 // pred_fallthru
      _
    %p1105 = scmp.le.s32.totalorder 2, %s11
    // Predicated region
    $region45: #{tpu_custom_call.1} parent=5 // pred_check
      %p1106 = pneg %p1105
    $region46: #{tpu_custom_call.1} parent=5 // pred_check_branch
      %1108 = sbr.rel (%p1106) target = $region48
    $region47: #{tpu_custom_call.1} parent=5 // pred_region
      %s1109 = ssub.s32 %s11, 2
      // Predicated region
      $region49: #{tpu_custom_call.1} parent=47 // pred_check
        %p1110 = pneg %p150
      $region50: #{tpu_custom_call.1} parent=47 // pred_check_branch
        %1112 = sbr.rel (%p1110) target = $region52
      $region51: #{tpu_custom_call.1} parent=47 // pred_region
        %s1113 = smul.u32 32, %s17
        %p1114 = scmp.lt.s32.totalorder %s1113, 63
        %s1115 = scalar_select %p1114, %s1113, 63
        %s1116 = smul.addr %s1115, 8
        %s1117 = scalar_lea.vmem %s5, %s1116
      $region52: #{tpu_custom_call.1} parent=47 // pred_fallthru
        _
    $region48: #{tpu_custom_call.1} parent=5 // pred_fallthru
      _
  $region6: #{tpu_custom_call.1} parent=0 // loop_footer
    %s15 = sadd.s32 1, %s11
  $region7: #{tpu_custom_call.1} parent=0 // loop_footer_branch
    %10 = sbr.rel target = $region3
  $region8: #{tpu_custom_call.1} parent=0 // loop_exit
    _

</llo_original>
